<compile_context>
chip_gen: v7x
topology: tpu7x:2x2x1
jax: 0.10.0
libtpu: 0.0.40
codegen_flags: <defaults>
</compile_context>

<pallas_src>
import numpy as np
import jax
import jax.numpy as jnp
from jax.experimental import pallas as pl
from jax.experimental.pallas import tpu as pltpu

# ---------------------------------------------------------------------------
# Deterministic synthetic "parameters" (the module pulls these from constants)
# ---------------------------------------------------------------------------
S2_ALL_12BANDS = {
    "true_color": [4, 3, 2],
    "true_color_zero_index": [3, 2, 1],
}
JIF_S2_MEAN = np.linspace(0.10, 1.20, 12).astype(np.float32)
JIF_S2_STD = np.linspace(0.50, 1.60, 12).astype(np.float32)


def _bicubic_matrix(in_size: int, out_size: int) -> np.ndarray:
    """Dense 1-D bicubic interpolation matrix matching PyTorch
    upsample_bicubic2d (align_corners=False, A=-0.75, border replication)."""
    A = -0.75

    def cc1(t):  # |t| <= 1
        return ((A + 2.0) * t - (A + 3.0)) * t * t + 1.0

    def cc2(t):  # 1 < |t| < 2
        return ((A * t - 5.0 * A) * t + 8.0 * A) * t - 4.0 * A

    scale = in_size / out_size
    W = np.zeros((out_size, in_size), dtype=np.float32)
    for j in range(out_size):
        src = (j + 0.5) * scale - 0.5
        i0 = int(np.floor(src))
        t = src - i0
        coeffs = (cc2(t + 1.0), cc1(t), cc1(1.0 - t), cc2(2.0 - t))
        for k in range(4):
            idx = min(max(i0 - 1 + k, 0), in_size - 1)
            W[j, idx] += coeffs[k]
    return W


# ---------------------------------------------------------------------------
# Fused kernel.  grid = (phase, group)
#   x_ref   : (Ng, H, W)      f32   current group of images (natural layout)
#   sb_ref  : (2, Ng, 1, W)   f32   [std row, mean*std row] per image
#   wwt_ref : (W, OW)         bf16  shared width weights (transposed)
#   wh_ref  : (OH, H)         bf16  shared height weights
#   o_ref   : (Ng, OH, OW)    f32   output block (natural layout)
#   max_ref : (1, 1)          f32   VMEM scratch, running global max
# ---------------------------------------------------------------------------
def _fused_kernel(x_ref, sb_ref, wwt_ref, wh_ref, o_ref, max_ref):
    p = pl.program_id(0)       # 0: global-max sweep, 1: fused resize sweep
    g = pl.program_id(1)
    ng = x_ref.shape[0]

    # normalize: (x + mean) * std  ==  x * std + mean * std   (single FMA)
    v = x_ref[...] * sb_ref[0] + sb_ref[1]                     # (Ng, H, W)

    @pl.when(jnp.logical_and(p == 0, g == 0))
    def _init():
        max_ref[...] = jnp.full((1, 1), -jnp.inf, dtype=jnp.float32)

    @pl.when(p == 0)
    def _max_sweep():
        m2 = v[0]
        for n in range(1, ng):                                 # VPU fold over images
            m2 = jnp.maximum(m2, v[n])
        max_ref[...] = jnp.maximum(
            max_ref[...], jnp.full((1, 1), jnp.max(m2), dtype=jnp.float32))

    @pl.when(p == 1)
    def _resize_sweep():
        # matches torch `x /= x.max()` (no epsilon / positivity guard)
        inv = 1.0 / max_ref[...]                               # (1, 1)
        wwt = wwt_ref[...]                                     # (W, OW)  bf16
        wh = wh_ref[...]                                       # (OH, H)  bf16
        for n in range(ng):                                    # static unroll (Ng small)
            y = jnp.clip(v[n] * inv, 0.0, 1.0)                 # (H, W) f32
            t = jnp.dot(y.astype(jnp.bfloat16), wwt,
                        preferred_element_type=jnp.float32)    # width pass  (H, OW)
            o = jnp.dot(wh, t.astype(jnp.bfloat16),
                        preferred_element_type=jnp.float32)    # height pass (OH, OW)
            o_ref[n] = o.astype(o_ref.dtype)


def _pick_group(N, H, W, OH, OW, budget_bytes=24 * 2**20):
    """Largest divisor of N (bounded) whose double-buffered in+out blocks fit."""
    cap = max(1, min(8, N // 2)) if N >= 2 else 1
    best = 1
    for ng in range(1, min(N, cap) + 1):
        if N % ng:
            continue
        if 2 * ng * (H * W + OH * OW) * 4 <= budget_bytes:
            best = ng
    return best


def bicubic_upscaled_baseline(x, output_size, interpolation="bicubic"):
    """Pallas equivalent of BicubicUpscaledBaseline.forward.

    x: (B, revisits, C, H, W) float32.  Returns (B, 1, 3, OH, OW) float32.
    """
    # TODO(synk): only 'bicubic' is implemented ('nearest'/'bilinear' would
    # just swap the 1-D weight-matrix builder).
    assert interpolation == "bicubic"

    B, R, C, H, W = x.shape
    OH, OW = output_size

    # --- glue: band selection + revisit selection (pure indexing) ---
    if C > 3:
        x = x[:, :, jnp.asarray(S2_ALL_12BANDS["true_color_zero_index"])]
    x = x[:, 0]                                     # first revisit -> (B, 3, H, W)
    C3 = x.shape[1]
    assert C3 == 3, "module assumes 3 true-color bands"
    N = B * C3
    x_imgs = x.reshape(N, H, W).astype(jnp.float32)   # natural layout, no transpose

    # Per-image constants; module does x += mean; x *= std (NOT (x-mean)/std).
    lr_bands = np.array(S2_ALL_12BANDS["true_color"]) - 1
    mean_c = JIF_S2_MEAN[lr_bands].astype(np.float32)        # (3,)
    std_c = JIF_S2_STD[lr_bands].astype(np.float32)          # (3,)
    scale_n = np.tile(std_c, B)                              # (N,)   x * std
    bias_n = np.tile(mean_c * std_c, B)                      # (N,)   + mean*std
    sb = np.stack(
        [np.broadcast_to(scale_n[:, None, None], (N, 1, W)),
         np.broadcast_to(bias_n[:, None, None], (N, 1, W))],
        axis=0).astype(np.float32)                           # (2, N, 1, W)
    sb = jnp.asarray(sb)

    # Separable bicubic weights, bf16 operands for the MXU (f32 accumulation).
    wwt = jnp.asarray(_bicubic_matrix(W, OW).T, dtype=jnp.bfloat16)   # (W, OW)
    wh = jnp.asarray(_bicubic_matrix(H, OH), dtype=jnp.bfloat16)      # (OH, H)

    Ng = _pick_group(N, H, W, OH, OW)
    G = N // Ng

    # Scoped VMEM sized from the actual blocks (double-buffered) + intermediates.
    need = (2 * (Ng * H * W * 4 + Ng * OH * OW * 4 + 2 * Ng * W * 4)
            + 2 * (W * OW + OH * H) * 2
            + Ng * (H * W + H * OW + OH * OW) * 4
            + (1 << 20))
    vmem_limit = int(min(max(2 * need, 32 * 2**20), 64 * 2**20))

    out = pl.pallas_call(
        _fused_kernel,
        out_shape=jax.ShapeDtypeStruct((N, OH, OW), jnp.float32),
        grid=(2, G),                                  # phase (outer), group (inner)
        in_specs=[
            pl.BlockSpec((Ng, H, W), lambda p, g: (g, 0, 0)),
            pl.BlockSpec((2, Ng, 1, W), lambda p, g: (0, g, 0, 0)),
            pl.BlockSpec((W, OW), lambda p, g: (0, 0)),
            pl.BlockSpec((OH, H), lambda p, g: (0, 0)),
        ],
        # p*g keeps the output block resident during the max-only phase, so the
        # output is written back to HBM exactly once (no garbage pre-writes).
        out_specs=pl.BlockSpec((Ng, OH, OW), lambda p, g: (p * g, 0, 0)),
        scratch_shapes=[pltpu.VMEM((1, 1), jnp.float32)],
        compiler_params=pltpu.CompilerParams(
            dimension_semantics=("arbitrary", "arbitrary"),
            vmem_limit_bytes=vmem_limit,
        ),
    )(x_imgs, sb, wwt, wh)

    # free reshapes back to (B, 1, 3, OH, OW)
    return out.reshape(B, C3, OH, OW)[:, None]


if __name__ == "__main__":
    key = jax.random.PRNGKey(0)
    # (batch=2, revisits=2, 12 bands, 16x16 low-res), upscale to 32x32
    x = jax.random.normal(key, (2, 2, 12, 16, 16), dtype=jnp.float32) * 0.1 + 0.5
    out = bicubic_upscaled_baseline(x, output_size=(32, 32), interpolation="bicubic")
    out = jax.block_until_ready(out)
    assert out.shape == (2, 1, 3, 32, 32), out.shape
    assert out.dtype == jnp.float32
    assert bool(jnp.all(jnp.isfinite(out)))

    # Pure-JAX reference (same separable bicubic matrices) as a wiring check.
    sel = x[:, 0][:, np.array(S2_ALL_12BANDS["true_color_zero_index"])]   # (2,3,16,16)
    mc = JIF_S2_MEAN[np.array(S2_ALL_12BANDS["true_color"]) - 1]
    sc = JIF_S2_STD[np.array(S2_ALL_12BANDS["true_color"]) - 1]
    ref = (sel + mc[None, :, None, None]) * sc[None, :, None, None]
    ref = jnp.clip(ref / jnp.max(ref), 0.0, 1.0)
    wh_np = jnp.asarray(_bicubic_matrix(16, 32))
    ww_np = jnp.asarray(_bicubic_matrix(16, 32))
    ref = jnp.einsum("oh,bchw,pw->bcop", wh_np, ref, ww_np,
                     precision="highest")[:, None]
    err = float(jnp.max(jnp.abs(out - ref)))
    assert err < 5e-2, err   # loose tolerance: bf16 MXU operands vs f32 XLA
    print("KERNEL_OK")
</pallas_src>

<mosaic_0001>
module attributes {stable_mosaic.version = 11 : i64} {
  func.func @_fused_kernel(%arg0: i32, %arg1: i32, %arg2: memref<3x16x16xf32, #tpu.memory_space<vmem>>, %arg3: memref<2x3x1x16xf32, #tpu.memory_space<vmem>>, %arg4: memref<16x32xbf16, #tpu.memory_space<vmem>>, %arg5: memref<32x16xbf16, #tpu.memory_space<vmem>>, %arg6: memref<3x32x32xf32, #tpu.memory_space<vmem>>, %arg7: memref<1x1xf32, #tpu.memory_space<vmem>>) attributes {dimension_semantics = [#tpu.dimension_semantics<arbitrary>, #tpu.dimension_semantics<arbitrary>], iteration_bounds = array<i64: 2, 2>, scalar_prefetch = 0 : i64, scratch_operands = 1 : i64, tpu.core_type = #tpu.core_type<tc>, window_params = [{transform_indices = @transform_0, window_bounds = array<i64: 3, 16, 16>}, {transform_indices = @transform_1, window_bounds = array<i64: 2, 3, 1, 16>}, {pipeline_mode = #tpu.pipeline_mode<synchronous>, transform_indices = @transform_2, window_bounds = array<i64: 16, 32>}, {pipeline_mode = #tpu.pipeline_mode<synchronous>, transform_indices = @transform_3, window_bounds = array<i64: 32, 16>}, {transform_indices = @transform_4, window_bounds = array<i64: 3, 32, 32>}]} {
    %c0 = arith.constant 0 : index
    %c0_0 = arith.constant 0 : index
    %c0_1 = arith.constant 0 : index
    %0 = vector.load %arg2[%c0, %c0_0, %c0_1] : memref<3x16x16xf32, #tpu.memory_space<vmem>>, vector<3x16x16xf32>
    %c0_2 = arith.constant 0 : index
    %c0_3 = arith.constant 0 : index
    %c0_4 = arith.constant 0 : index
    %c0_5 = arith.constant 0 : index
    %1 = vector.load %arg3[%c0_2, %c0_3, %c0_4, %c0_5] : memref<2x3x1x16xf32, #tpu.memory_space<vmem>>, vector<1x3x1x16xf32>
    %2 = vector.shape_cast %1 : vector<1x3x1x16xf32> to vector<3x1x16xf32>
    %3 = vector.broadcast %2 : vector<3x1x16xf32> to vector<3x16x16xf32>
    %4 = arith.mulf %0, %3 : vector<3x16x16xf32>
    %c1 = arith.constant 1 : index
    %c0_6 = arith.constant 0 : index
    %c0_7 = arith.constant 0 : index
    %c0_8 = arith.constant 0 : index
    %5 = vector.load %arg3[%c1, %c0_6, %c0_7, %c0_8] : memref<2x3x1x16xf32, #tpu.memory_space<vmem>>, vector<1x3x1x16xf32>
    %6 = vector.shape_cast %5 : vector<1x3x1x16xf32> to vector<3x1x16xf32>
    %7 = vector.broadcast %6 : vector<3x1x16xf32> to vector<3x16x16xf32>
    %8 = arith.addf %4, %7 : vector<3x16x16xf32>
    %c0_i32 = arith.constant 0 : i32
    %9 = arith.cmpi eq, %arg0, %c0_i32 : i32
    %c0_i32_9 = arith.constant 0 : i32
    %10 = arith.cmpi eq, %arg1, %c0_i32_9 : i32
    %11 = arith.andi %9, %10 : i1
    %12 = arith.extui %11 : i1 to i32
    %c0_i32_10 = arith.constant 0 : i32
    %13 = arith.cmpi ne, %12, %c0_i32_10 : i32
    scf.if %13 {
      %cst = arith.constant 0xFF800000 : f32
      %20 = vector.broadcast %cst : f32 to vector<1x1xf32>
      %c0_14 = arith.constant 0 : index
      %c0_15 = arith.constant 0 : index
      %21 = vector.load %arg7[%c0_14, %c0_15] : memref<1x1xf32, #tpu.memory_space<vmem>>, vector<1x1xf32>
      tpu.vector_store %arg7[%c0_14, %c0_15], %20 {strides = array<i32>} : memref<1x1xf32, #tpu.memory_space<vmem>>, vector<1x1xf32>,
    } else {
    }
    %c0_i32_11 = arith.constant 0 : i32
    %14 = arith.cmpi eq, %arg0, %c0_i32_11 : i32
    %15 = arith.extui %14 : i1 to i32
    %c0_i32_12 = arith.constant 0 : i32
    %16 = arith.cmpi ne, %15, %c0_i32_12 : i32
    scf.if %16 {
      %20 = vector.extract_strided_slice %8 {offsets = [0, 0, 0], sizes = [1, 16, 16], strides = [1, 1, 1]} : vector<3x16x16xf32> to vector<1x16x16xf32>
      %21 = vector.shape_cast %20 : vector<1x16x16xf32> to vector<16x16xf32>
      %22 = vector.extract_strided_slice %8 {offsets = [1, 0, 0], sizes = [1, 16, 16], strides = [1, 1, 1]} : vector<3x16x16xf32> to vector<1x16x16xf32>
      %23 = vector.shape_cast %22 : vector<1x16x16xf32> to vector<16x16xf32>
      %24 = arith.maximumf %21, %23 : vector<16x16xf32>
      %25 = vector.extract_strided_slice %8 {offsets = [2, 0, 0], sizes = [1, 16, 16], strides = [1, 1, 1]} : vector<3x16x16xf32> to vector<1x16x16xf32>
      %26 = vector.shape_cast %25 : vector<1x16x16xf32> to vector<16x16xf32>
      %27 = arith.maximumf %24, %26 : vector<16x16xf32>
      %c0_14 = arith.constant 0 : index
      %c0_15 = arith.constant 0 : index
      %28 = vector.load %arg7[%c0_14, %c0_15] : memref<1x1xf32, #tpu.memory_space<vmem>>, vector<1x1xf32>
      %29 = vector.shape_cast %27 : vector<16x16xf32> to vector<1x16x16xf32>
      %cst = arith.constant dense<0xFF800000> : vector<1xf32>
      %30 = vector.multi_reduction <maximumf>, %29, %cst [1, 2] : vector<1x16x16xf32> to vector<1xf32>
      %31 = vector.shape_cast %30 : vector<1xf32> to vector<1x1x1xf32>
      %32 = vector.extract %31[0, 0, 0] : f32 from vector<1x1x1xf32>
      %33 = vector.broadcast %32 : f32 to vector<1x1xf32>
      %34 = arith.maximumf %28, %33 : vector<1x1xf32>
      %c0_16 = arith.constant 0 : index
      %c0_17 = arith.constant 0 : index
      %35 = vector.load %arg7[%c0_16, %c0_17] : memref<1x1xf32, #tpu.memory_space<vmem>>, vector<1x1xf32>
      tpu.vector_store %arg7[%c0_16, %c0_17], %34 {strides = array<i32>} : memref<1x1xf32, #tpu.memory_space<vmem>>, vector<1x1xf32>,
    } else {
    }
    %c1_i32 = arith.constant 1 : i32
    %17 = arith.cmpi eq, %arg0, %c1_i32 : i32
    %18 = arith.extui %17 : i1 to i32
    %c0_i32_13 = arith.constant 0 : i32
    %19 = arith.cmpi ne, %18, %c0_i32_13 : i32
    scf.if %19 {
      %c0_14 = arith.constant 0 : index
      %c0_15 = arith.constant 0 : index
      %20 = vector.load %arg7[%c0_14, %c0_15] : memref<1x1xf32, #tpu.memory_space<vmem>>, vector<1x1xf32>
      %cst = arith.constant 1.000000e+00 : f32
      %21 = vector.broadcast %cst : f32 to vector<1x1xf32>
      %22 = arith.divf %21, %20 : vector<1x1xf32>
      %c0_16 = arith.constant 0 : index
      %c0_17 = arith.constant 0 : index
      %23 = vector.load %arg4[%c0_16, %c0_17] : memref<16x32xbf16, #tpu.memory_space<vmem>>, vector<16x32xbf16>
      %c0_18 = arith.constant 0 : index
      %c0_19 = arith.constant 0 : index
      %24 = vector.load %arg5[%c0_18, %c0_19] : memref<32x16xbf16, #tpu.memory_space<vmem>>, vector<32x16xbf16>
      %25 = vector.extract_strided_slice %8 {offsets = [0, 0, 0], sizes = [1, 16, 16], strides = [1, 1, 1]} : vector<3x16x16xf32> to vector<1x16x16xf32>
      %26 = vector.shape_cast %25 : vector<1x16x16xf32> to vector<16x16xf32>
      %27 = vector.broadcast %22 : vector<1x1xf32> to vector<16x16xf32>
      %28 = arith.mulf %26, %27 : vector<16x16xf32>
      %cst_20 = arith.constant 0.000000e+00 : f32
      %cst_21 = arith.constant 1.000000e+00 : f32
      %29 = vector.broadcast %cst_20 : f32 to vector<16x16xf32>
      %30 = arith.maximumf %29, %28 : vector<16x16xf32>
      %31 = vector.broadcast %cst_21 : f32 to vector<16x16xf32>
      %32 = arith.minimumf %31, %30 : vector<16x16xf32>
      %33 = arith.truncf %32 : vector<16x16xf32> to vector<16x16xbf16>
      %cst_22 = arith.constant dense<0.000000e+00> : vector<16x32xf32>
      %34 = tpu.matmul %33, %23, %cst_22 {dimension_numbers = #tpu.dot_dimension_numbers<[1], [0], [0], [1], [0, 0, 1, 1], [], []>} : vector<16x16xbf16>, vector<16x32xbf16>, vector<16x32xf32> -> vector<16x32xf32>
      %35 = arith.truncf %34 : vector<16x32xf32> to vector<16x32xbf16>
      %cst_23 = arith.constant dense<0.000000e+00> : vector<32x32xf32>
      %36 = tpu.matmul %24, %35, %cst_23 {dimension_numbers = #tpu.dot_dimension_numbers<[1], [0], [0], [1], [0, 0, 1, 1], [], []>} : vector<32x16xbf16>, vector<16x32xbf16>, vector<32x32xf32> -> vector<32x32xf32>
      %c0_24 = arith.constant 0 : index
      %c0_25 = arith.constant 0 : index
      %c0_26 = arith.constant 0 : index
      %37 = vector.load %arg6[%c0_24, %c0_25, %c0_26] : memref<3x32x32xf32, #tpu.memory_space<vmem>>, vector<1x32x32xf32>
      %38 = vector.shape_cast %37 : vector<1x32x32xf32> to vector<32x32xf32>
      %39 = vector.shape_cast %36 : vector<32x32xf32> to vector<1x32x32xf32>
      tpu.vector_store %arg6[%c0_24, %c0_25, %c0_26], %39 {strides = array<i32>} : memref<3x32x32xf32, #tpu.memory_space<vmem>>, vector<1x32x32xf32>,
      %40 = vector.extract_strided_slice %8 {offsets = [1, 0, 0], sizes = [1, 16, 16], strides = [1, 1, 1]} : vector<3x16x16xf32> to vector<1x16x16xf32>
      %41 = vector.shape_cast %40 : vector<1x16x16xf32> to vector<16x16xf32>
      %42 = vector.broadcast %22 : vector<1x1xf32> to vector<16x16xf32>
      %43 = arith.mulf %41, %42 : vector<16x16xf32>
      %cst_27 = arith.constant 0.000000e+00 : f32
      %cst_28 = arith.constant 1.000000e+00 : f32
      %44 = vector.broadcast %cst_27 : f32 to vector<16x16xf32>
      %45 = arith.maximumf %44, %43 : vector<16x16xf32>
      %46 = vector.broadcast %cst_28 : f32 to vector<16x16xf32>
      %47 = arith.minimumf %46, %45 : vector<16x16xf32>
      %48 = arith.truncf %47 : vector<16x16xf32> to vector<16x16xbf16>
      %cst_29 = arith.constant dense<0.000000e+00> : vector<16x32xf32>
      %49 = tpu.matmul %48, %23, %cst_29 {dimension_numbers = #tpu.dot_dimension_numbers<[1], [0], [0], [1], [0, 0, 1, 1], [], []>} : vector<16x16xbf16>, vector<16x32xbf16>, vector<16x32xf32> -> vector<16x32xf32>
      %50 = arith.truncf %49 : vector<16x32xf32> to vector<16x32xbf16>
      %cst_30 = arith.constant dense<0.000000e+00> : vector<32x32xf32>
      %51 = tpu.matmul %24, %50, %cst_30 {dimension_numbers = #tpu.dot_dimension_numbers<[1], [0], [0], [1], [0, 0, 1, 1], [], []>} : vector<32x16xbf16>, vector<16x32xbf16>, vector<32x32xf32> -> vector<32x32xf32>
      %c1_31 = arith.constant 1 : index
      %c0_32 = arith.constant 0 : index
      %c0_33 = arith.constant 0 : index
      %52 = vector.load %arg6[%c1_31, %c0_32, %c0_33] : memref<3x32x32xf32, #tpu.memory_space<vmem>>, vector<1x32x32xf32>
      %53 = vector.shape_cast %52 : vector<1x32x32xf32> to vector<32x32xf32>
      %54 = vector.shape_cast %51 : vector<32x32xf32> to vector<1x32x32xf32>
      tpu.vector_store %arg6[%c1_31, %c0_32, %c0_33], %54 {strides = array<i32>} : memref<3x32x32xf32, #tpu.memory_space<vmem>>, vector<1x32x32xf32>,
      %55 = vector.extract_strided_slice %8 {offsets = [2, 0, 0], sizes = [1, 16, 16], strides = [1, 1, 1]} : vector<3x16x16xf32> to vector<1x16x16xf32>
      %56 = vector.shape_cast %55 : vector<1x16x16xf32> to vector<16x16xf32>
      %57 = vector.broadcast %22 : vector<1x1xf32> to vector<16x16xf32>
      %58 = arith.mulf %56, %57 : vector<16x16xf32>
      %cst_34 = arith.constant 0.000000e+00 : f32
      %cst_35 = arith.constant 1.000000e+00 : f32
      %59 = vector.broadcast %cst_34 : f32 to vector<16x16xf32>
      %60 = arith.maximumf %59, %58 : vector<16x16xf32>
      %61 = vector.broadcast %cst_35 : f32 to vector<16x16xf32>
      %62 = arith.minimumf %61, %60 : vector<16x16xf32>
      %63 = arith.truncf %62 : vector<16x16xf32> to vector<16x16xbf16>
      %cst_36 = arith.constant dense<0.000000e+00> : vector<16x32xf32>
      %64 = tpu.matmul %63, %23, %cst_36 {dimension_numbers = #tpu.dot_dimension_numbers<[1], [0], [0], [1], [0, 0, 1, 1], [], []>} : vector<16x16xbf16>, vector<16x32xbf16>, vector<16x32xf32> -> vector<16x32xf32>
      %65 = arith.truncf %64 : vector<16x32xf32> to vector<16x32xbf16>
      %cst_37 = arith.constant dense<0.000000e+00> : vector<32x32xf32>
      %66 = tpu.matmul %24, %65, %cst_37 {dimension_numbers = #tpu.dot_dimension_numbers<[1], [0], [0], [1], [0, 0, 1, 1], [], []>} : vector<32x16xbf16>, vector<16x32xbf16>, vector<32x32xf32> -> vector<32x32xf32>
      %c2 = arith.constant 2 : index
      %c0_38 = arith.constant 0 : index
      %c0_39 = arith.constant 0 : index
      %67 = vector.load %arg6[%c2, %c0_38, %c0_39] : memref<3x32x32xf32, #tpu.memory_space<vmem>>, vector<1x32x32xf32>
      %68 = vector.shape_cast %67 : vector<1x32x32xf32> to vector<32x32xf32>
      %69 = vector.shape_cast %66 : vector<32x32xf32> to vector<1x32x32xf32>
      tpu.vector_store %arg6[%c2, %c0_38, %c0_39], %69 {strides = array<i32>} : memref<3x32x32xf32, #tpu.memory_space<vmem>>, vector<1x32x32xf32>,
    } else {
    }
    return
  }
  func.func @transform_0(%arg0: i32, %arg1: i32) -> (i32, i32, i32) {
    %c0_i32 = arith.constant 0 : i32
    %c0_i32_0 = arith.constant 0 : i32
    %c0_i32_1 = arith.constant 0 : i32
    return %arg1, %c0_i32, %c0_i32_0 : i32, i32, i32
  }
  func.func @transform_1(%arg0: i32, %arg1: i32) -> (i32, i32, i32, i32) {
    %c0_i32 = arith.constant 0 : i32
    %c0_i32_0 = arith.constant 0 : i32
    %c0_i32_1 = arith.constant 0 : i32
    %c0_i32_2 = arith.constant 0 : i32
    return %c0_i32, %arg1, %c0_i32_0, %c0_i32_1 : i32, i32, i32, i32
  }
  func.func @transform_2(%arg0: i32, %arg1: i32) -> (i32, i32) {
    %c0_i32 = arith.constant 0 : i32
    %c0_i32_0 = arith.constant 0 : i32
    %c0_i32_1 = arith.constant 0 : i32
    return %c0_i32, %c0_i32_0 : i32, i32
  }
  func.func @transform_3(%arg0: i32, %arg1: i32) -> (i32, i32) {
    %c0_i32 = arith.constant 0 : i32
    %c0_i32_0 = arith.constant 0 : i32
    %c0_i32_1 = arith.constant 0 : i32
    return %c0_i32, %c0_i32_0 : i32, i32
  }
  func.func @transform_4(%arg0: i32, %arg1: i32) -> (i32, i32, i32) {
    %0 = arith.muli %arg0, %arg1 : i32
    %c0_i32 = arith.constant 0 : i32
    %c0_i32_0 = arith.constant 0 : i32
    %c0_i32_1 = arith.constant 0 : i32
    return %0, %c0_i32, %c0_i32_0 : i32, i32, i32
  }
}

</mosaic_0001>

<llo_original>
// kernel: tpu_custom_call.1
$region0: #{tpu_custom_call.1}
  #allocation0 [shape = 'u32[]', space=smem, size = 0x4, offset = 0x4, fixed_abs, tag = 'smem constant byte address 0x4 - core index']
  #allocation1 [shape = 'u32[144,128]{1,0:T(1,128)}', space=vmem, size = 0x12000, scoped, tag = 'internal scratch']
  #allocation2 [shape = 'f32[1,1]{1,0:T(1,128)}', space=vmem, size = 0x200, scoped, tag = 'scratch operand']
  %s0 = inlined_call_operand.hbm [shape: f32[6,16,16], index: 0, kind: input, shape index: {}]
  %s1 = inlined_call_operand.vmem [shape: f32[2,6,1,16], index: 1, kind: input, shape index: {}]
  %s2 = inlined_call_operand.vmem [shape: bf16[16,32], index: 2, kind: input, shape index: {}]
  %s3 = inlined_call_operand.vmem [shape: bf16[32,16], index: 3, kind: input, shape index: {}]
  %s4 = inlined_call_operand.hbm [shape: f32[6,32,32], index: 4, kind: output, shape index: {}]
  %s5 = sld [smem:[#allocation0]]
  $region99: #{tpu_custom_call.1} parent=0
    _
  %s7 = ssub.s32 1, %s5
  %s8 = scalar_select 0, %s7, %s5
  $region1: #{tpu_custom_call.1} parent=0
    #allocation3 [shape = 'u8[49152]{0}', space=vmem, size = 0xc000, scoped, tag = 'input window, operand 0']
    #allocation4 [shape = 's32[2]{0}', space=sflag, size = 0x8, scoped, tag = 'scoped memory for tpu_custom_call.1']
    #allocation5 [shape = 's32[2]{0}', space=sflag, size = 0x8, scoped, tag = 'scoped memory for tpu_custom_call.1']
    #allocation6 [shape = 'u8[6144]{0}', space=vmem, size = 0x1800, scoped, tag = 'input window, operand 1']
    #allocation7 [shape = 'u8[98304]{0}', space=vmem, size = 0x18000, scoped, tag = 'output window, operand 0']
    %9 = vsyncpa [#allocation4], 0
    %s10 = scalar_lea.sflag [#allocation4], 1
    %11 = vsyncpa %s10, 0
    %12 = vsyncpa [#allocation5], 0
    %s13 = scalar_lea.sflag [#allocation5], 1
    %14 = vsyncpa %s13, 0
    loop: start=0, step=1, limit=6
    $region2: #{tpu_custom_call.1} parent=1 // loop_pre_header
      _
    $region3: #{tpu_custom_call.1} parent=1 // loop_header
      %s16 = sphi 0, %s20
      %p17 = scmp.ge.s32.totalorder %s16, 6
      %s23 = sphi 0, %s35
      %s24 = sphi 0, %s31
      %s25 = sphi 0, %s23
      %s26 = sphi 0, %s24
      %s27 = sphi 0, %s25
      %s28 = sphi 0, %s26
      %s38 = sphi 0, %s40
      %s41 = sphi 0, %s38
      %s42 = sphi 0, %s41
      %s58 = sphi 0, %s42
      %s64 = sphi 0, %s66
      %s67 = sphi 0, %s64
      %s68 = sphi 0, %s67
      %s84 = sphi 0, %s68
      %s88 = sphi 0, %s88
      %s90 = sphi 0, %s88
      %s91 = sphi 0, %s90
      %s105 = sphi 0, %s91
      %s109 = sphi 0, %s109
      %s111 = sphi 0, %s109
      %s112 = sphi 0, %s111
      %s126 = sphi 0, %s112
      %s134 = sphi 0, %s136
      %s137 = sphi 0, %s134
      %s138 = sphi 0, %s137
      %s154 = sphi 0, %s138
    $region4: #{tpu_custom_call.1} parent=1 // loop_header_branch
      %19 = sbr.rel (%p17) target = $region8
    $region5: #{tpu_custom_call.1} parent=1 // loop_body
      %s21 = ssub.s32 %s16, 1
      %s22 = ssub.s32 %s16, 2
      %s29 = sadd.s32 1, %s24
      %p30 = scmp.ge.s32.totalorder %s29, 2
      %s31 = scalar_select %p30, 0, %s29
      %s32 = sadd.s32 1, %s23
      %s33 = scalar_select %p30, %s32, %s23
      %p34 = scmp.ge.s32.totalorder %s33, 2
      %s35 = scalar_select %p34, 0, %s33
      %s36 = ssub.s32 %s24, %s31
      %p37 = scmp.eq.s32.totalorder %s36, 0
      %s39 = sadd.s32 %s38, 1
      %s40 = scalar_select %p37, %s38, %s39
      %p43 = pneg %p37
      %p44 = scmp.eq.s32.totalorder %s16, 3
      %p45 = por %p43, %p44
      %p46 = scmp.ne.s32.totalorder %s38, %s41
      %p47 = scmp.eq.s32.totalorder %s16, 0
      %p48 = por %p46, %p47
      %p49 = scmp.ne.s32.totalorder %s38, %s41
      %p50 = scmp.eq.s32.totalorder %s21, 3
      %p51 = por %p49, %p50
      %p52 = scmp.ne.s32.totalorder %s41, %s42
      %p53 = scmp.eq.s32.totalorder %s21, 0
      %p54 = por %p52, %p53
      %p55 = scmp.ne.s32.totalorder %s41, %s42
      %p56 = scmp.eq.s32.totalorder %s22, 3
      %p57 = por %p55, %p56
      %p59 = scmp.ne.s32.totalorder %s42, %s58
      %p60 = scmp.eq.s32.totalorder %s22, 0
      %p61 = por %p59, %p60
      %s62 = ssub.s32 %s24, %s31
      %p63 = scmp.eq.s32.totalorder %s62, 0
      %s65 = sadd.s32 %s64, 1
      %s66 = scalar_select %p63, %s64, %s65
      %p69 = pneg %p63
      %p70 = scmp.eq.s32.totalorder %s16, 3
      %p71 = por %p69, %p70
      %p72 = scmp.ne.s32.totalorder %s64, %s67
      %p73 = scmp.eq.s32.totalorder %s16, 0
      %p74 = por %p72, %p73
      %p75 = scmp.ne.s32.totalorder %s64, %s67
      %p76 = scmp.eq.s32.totalorder %s21, 3
      %p77 = por %p75, %p76
      %p78 = scmp.ne.s32.totalorder %s67, %s68
      %p79 = scmp.eq.s32.totalorder %s21, 0
      %p80 = por %p78, %p79
      %p81 = scmp.ne.s32.totalorder %s67, %s68
      %p82 = scmp.eq.s32.totalorder %s22, 3
      %p83 = por %p81, %p82
      %p85 = scmp.ne.s32.totalorder %s68, %s84
      %p86 = scmp.eq.s32.totalorder %s22, 0
      %p87 = por %p85, %p86
      %s89 = sadd.s32 %s88, 1
      %p92 = scmp.eq.s32.totalorder %s16, 3
      %p93 = scmp.ne.s32.totalorder %s88, %s90
      %p94 = scmp.eq.s32.totalorder %s16, 0
      %p95 = por %p93, %p94
      %p96 = scmp.ne.s32.totalorder %s88, %s90
      %p97 = scmp.eq.s32.totalorder %s21, 3
      %p98 = por %p96, %p97
      %p99 = scmp.ne.s32.totalorder %s90, %s91
      %p100 = scmp.eq.s32.totalorder %s21, 0
      %p101 = por %p99, %p100
      %p102 = scmp.ne.s32.totalorder %s90, %s91
      %p103 = scmp.eq.s32.totalorder %s22, 3
      %p104 = por %p102, %p103
      %p106 = scmp.ne.s32.totalorder %s91, %s105
      %p107 = scmp.eq.s32.totalorder %s22, 0
      %p108 = por %p106, %p107
      %s110 = sadd.s32 %s109, 1
      %p113 = scmp.eq.s32.totalorder %s16, 3
      %p114 = scmp.ne.s32.totalorder %s109, %s111
      %p115 = scmp.eq.s32.totalorder %s16, 0
      %p116 = por %p114, %p115
      %p117 = scmp.ne.s32.totalorder %s109, %s111
      %p118 = scmp.eq.s32.totalorder %s21, 3
      %p119 = por %p117, %p118
      %p120 = scmp.ne.s32.totalorder %s111, %s112
      %p121 = scmp.eq.s32.totalorder %s21, 0
      %p122 = por %p120, %p121
      %p123 = scmp.ne.s32.totalorder %s111, %s112
      %p124 = scmp.eq.s32.totalorder %s22, 3
      %p125 = por %p123, %p124
      %p127 = scmp.ne.s32.totalorder %s112, %s126
      %p128 = scmp.eq.s32.totalorder %s22, 0
      %p129 = por %p127, %p128
      %s130 = smul.u32 %s23, %s24
      %s131 = smul.u32 %s35, %s31
      %s132 = ssub.s32 %s130, %s131
      %p133 = scmp.eq.s32.totalorder %s132, 0
      %s135 = sadd.s32 %s134, 1
      %s136 = scalar_select %p133, %s134, %s135
      %p139 = pneg %p133
      %p140 = scmp.eq.s32.totalorder %s16, 3
      %p141 = por %p139, %p140
      %p142 = scmp.ne.s32.totalorder %s134, %s137
      %p143 = scmp.eq.s32.totalorder %s16, 0
      %p144 = por %p142, %p143
      %p145 = scmp.ne.s32.totalorder %s134, %s137
      %p146 = scmp.eq.s32.totalorder %s21, 3
      %p147 = por %p145, %p146
      %p148 = scmp.ne.s32.totalorder %s137, %s138
      %p149 = scmp.eq.s32.totalorder %s21, 0
      %p150 = por %p148, %p149
      %p151 = scmp.ne.s32.totalorder %s137, %s138
      %p152 = scmp.eq.s32.totalorder %s22, 3
      %p153 = por %p151, %p152
      %p155 = scmp.ne.s32.totalorder %s138, %s154
      %p156 = scmp.eq.s32.totalorder %s22, 0
      %p157 = por %p155, %p156
      %p158 = scmp.le.s32.totalorder 1, %s16
      %p159 = scmp.lt.s32.totalorder %s16, 5
      %p160 = pnand %p158, %p159
      %p161 = pneg %p160
      // Predicated region
      $region9: #{tpu_custom_call.1} parent=5 // pred_check
        _
      $region10: #{tpu_custom_call.1} parent=5 // pred_check_branch
        %163 = sbr.rel (%p160) target = $region12
      $region11: #{tpu_custom_call.1} parent=5 // pred_region
        %s164 = ssub.s32 %s16, 1
        // Predicated region
        $region13: #{tpu_custom_call.1} parent=11 // pred_check
          %p165 = pneg %p101
        $region14: #{tpu_custom_call.1} parent=11 // pred_check_branch
          %167 = sbr.rel (%p165) target = $region16
        $region15: #{tpu_custom_call.1} parent=11 // pred_region
          _
        $region16: #{tpu_custom_call.1} parent=11 // pred_fallthru
          _
        // Predicated region
        $region17: #{tpu_custom_call.1} parent=11 // pred_check
          %p168 = pneg %p122
        $region18: #{tpu_custom_call.1} parent=11 // pred_check_branch
          %170 = sbr.rel (%p168) target = $region20
        $region19: #{tpu_custom_call.1} parent=11 // pred_region
          _
        $region20: #{tpu_custom_call.1} parent=11 // pred_fallthru
          _
      $region12: #{tpu_custom_call.1} parent=5 // pred_fallthru
        _
      %p171 = scmp.lt.s32.totalorder %s16, 4
      // Predicated region
      $region21: #{tpu_custom_call.1} parent=5 // pred_check
        %p172 = pneg %p171
      $region22: #{tpu_custom_call.1} parent=5 // pred_check_branch
        %174 = sbr.rel (%p172) target = $region24
      $region23: #{tpu_custom_call.1} parent=5 // pred_region
        // Predicated region
        $region25: #{tpu_custom_call.1} parent=23 // pred_check
          %p175 = pneg %p48
        $region26: #{tpu_custom_call.1} parent=23 // pred_check_branch
          %177 = sbr.rel (%p175) target = $region28
        $region27: #{tpu_custom_call.1} parent=23 // pred_region
          %s178 = sand.u32 %s38, 1
          %s179 = scalar_lea.sflag [#allocation4], %s178
          %s180 = sand.u32 %s38, 1
          %s181 = smul.addr %s180, 48
          %s182 = scalar_lea.vmem [#allocation3], %s181
          %s183 = smul.u32 3, %s24
          %s185 = ssub.s32 768, 768
          %186 = vsyncadd %s179, %s185
          %s187 = smul.addr %s183, 2
          %s188 = smul.addr %s187, 128
          %s189 = scalar_lea.hbm %s0, %s188
          %s190 = sshll.u32 %s182, 4
          %s191 = int_to_ptr.vmem [resolvable:$true] %s190
          %196 = dma.hbm_to_vmem [thread:$0]  %s189, 768, %s191, %s179, 128, 128, 8
        $region28: #{tpu_custom_call.1} parent=23 // pred_fallthru
          _
        // Predicated region
        $region29: #{tpu_custom_call.1} parent=23 // pred_check
          %p197 = pneg %p74
        $region30: #{tpu_custom_call.1} parent=23 // pred_check_branch
          %199 = sbr.rel (%p197) target = $region32
        $region31: #{tpu_custom_call.1} parent=23 // pred_region
          %s200 = sand.u32 %s64, 1
          %s201 = sand.u32 %s64, 1
          %s202 = smul.addr %s201, 6
          %s203 = scalar_lea.vmem [#allocation6], %s202
          %s204 = smul.u32 3, %s24
          %s205 = scalar_lea.vmem %s1, %s204
          // Predicated region
          $region33: #{tpu_custom_call.1} parent=31 // pred_check
            _
          $region34: #{tpu_custom_call.1} parent=31 // pred_check_branch
            %207 = sbr.rel (0) target = $region36
          $region35: #{tpu_custom_call.1} parent=31 // pred_region
            // Predicated region
            $region37: #{tpu_custom_call.1} parent=35 // pred_check
              _
            $region38: #{tpu_custom_call.1} parent=35 // pred_check_branch
              %209 = sbr.rel target = $region40
            $region39: #{tpu_custom_call.1} parent=35 // pred_region
              // Predicated region
              $region52: #{tpu_custom_call.1} parent=39 // pred_check
                _
              $region53: #{tpu_custom_call.1} parent=39 // pred_check_branch
                %226 = sbr.rel (0) target = $region55
              $region54: #{tpu_custom_call.1} parent=39 // pred_region
                loop: start=0, step=1, limit=1
                $region56: #{tpu_custom_call.1} parent=54 // loop_pre_header
                  _
                $region57: #{tpu_custom_call.1} parent=54 // loop_header
                  %s229 = sphi 0, %s233
                  %p230 = scmp.ge.s32.totalorder %s229, 1
                  %s234 = sphi %s205, %s205
                  %s235 = sphi %s203, %s203
                $region58: #{tpu_custom_call.1} parent=54 // loop_header_branch
                  %232 = sbr.rel (%p230) target = $region62
                $region59: #{tpu_custom_call.1} parent=54 // loop_body
                  %v236 = vld [vmem:[%s234] sm:$0x7]
                  %237 = vst [vmem:[%s235] sm:$0x7] %v236
                  %v238 = vld [vmem:[%s234 + $0x6] sm:$0x7]
                  %239 = vst [vmem:[%s235 + $0x3] sm:$0x7] %v238
                $region60: #{tpu_custom_call.1} parent=54 // loop_footer
                  %s233 = sadd.s32 1, %s229
                $region61: #{tpu_custom_call.1} parent=54 // loop_footer_branch
                  %228 = sbr.rel target = $region57
                $region62: #{tpu_custom_call.1} parent=54 // loop_exit
                  _
              $region55: #{tpu_custom_call.1} parent=39 // pred_fallthru
                _
            $region40: #{tpu_custom_call.1} parent=35 // pred_fallthru
              _
            // Predicated region
            $region41: #{tpu_custom_call.1} parent=35 // pred_check
              _
            $region42: #{tpu_custom_call.1} parent=35 // pred_check_branch
              %211 = sbr.rel (0) target = $region44
            $region43: #{tpu_custom_call.1} parent=35 // pred_region
              loop: start=0, step=1, limit=1
              $region45: #{tpu_custom_call.1} parent=43 // loop_pre_header
                _
              $region46: #{tpu_custom_call.1} parent=43 // loop_header
                %s214 = sphi 0, %s218
                %p215 = scmp.ge.s32.totalorder %s214, 1
                %s219 = sphi %s205, %s205
                %s220 = sphi %s203, %s203
              $region47: #{tpu_custom_call.1} parent=43 // loop_header_branch
                %217 = sbr.rel (%p215) target = $region51
              $region48: #{tpu_custom_call.1} parent=43 // loop_body
                %v221 = vld [vmem:[%s219] sm:$0x7]
                %222 = vst [vmem:[%s220] sm:$0x7] %v221
                %v223 = vld [vmem:[%s219 + $0x6] sm:$0x7]
                %224 = vst [vmem:[%s220 + $0x3] sm:$0x7] %v223
              $region49: #{tpu_custom_call.1} parent=43 // loop_footer
                %s218 = sadd.s32 1, %s214
              $region50: #{tpu_custom_call.1} parent=43 // loop_footer_branch
                %213 = sbr.rel target = $region46
              $region51: #{tpu_custom_call.1} parent=43 // loop_exit
                _
            $region44: #{tpu_custom_call.1} parent=35 // pred_fallthru
              _
          $region36: #{tpu_custom_call.1} parent=31 // pred_fallthru
            _
          %240 = vnop
        $region32: #{tpu_custom_call.1} parent=23 // pred_fallthru
          _
      $region24: #{tpu_custom_call.1} parent=5 // pred_fallthru
        _
      %p241 = scmp.le.s32.totalorder 1, %s16
      %p242 = scmp.lt.s32.totalorder %s16, 5
      %p243 = pnand %p241, %p242
      %p244 = pneg %p243
      // Predicated region
      $region63: #{tpu_custom_call.1} parent=5 // pred_check
        _
      $region64: #{tpu_custom_call.1} parent=5 // pred_check_branch
        %246 = sbr.rel (%p243) target = $region66
      $region65: #{tpu_custom_call.1} parent=5 // pred_region
        %s247 = ssub.s32 %s16, 1
        %s248 = sand.u32 %s41, 1
        %s249 = scalar_lea.sflag [#allocation4], %s248
        %s250 = sand.u32 %s41, 1
        %s251 = smul.addr %s250, 48
        %s252 = scalar_lea.vmem [#allocation3], %s251
        // Predicated region
        $region67: #{tpu_custom_call.1} parent=65 // pred_check
          %p253 = pneg %p54
        $region68: #{tpu_custom_call.1} parent=65 // pred_check_branch
          %255 = sbr.rel (%p253) target = $region70
        $region69: #{tpu_custom_call.1} parent=65 // pred_region
          %256 = dma.done %s249, 768
        $region70: #{tpu_custom_call.1} parent=65 // pred_fallthru
          _
        %s257 = sand.u32 %s67, 1
        %s258 = sand.u32 %s67, 1
        %s259 = smul.addr %s258, 6
        %s260 = scalar_lea.vmem [#allocation6], %s259
        // Predicated region
        $region71: #{tpu_custom_call.1} parent=65 // pred_check
          %p261 = pneg %p80
        $region72: #{tpu_custom_call.1} parent=65 // pred_check_branch
          %263 = sbr.rel (%p261) target = $region74
        $region73: #{tpu_custom_call.1} parent=65 // pred_region
          _
        $region74: #{tpu_custom_call.1} parent=65 // pred_fallthru
          _
        %s264 = sand.u32 %s41, 1
        %s265 = scalar_lea.sflag [#allocation4], %s264
        %s266 = sand.u32 %s41, 1
        %s267 = smul.addr %s266, 48
        %s268 = scalar_lea.vmem [#allocation3], %s267
        %p269 = pneg %p54
        %p270 = pneg %p51
        %s271 = sand.u32 %s67, 1
        %s272 = sand.u32 %s67, 1
        %s273 = smul.addr %s272, 6
        %s274 = scalar_lea.vmem [#allocation6], %s273
        %p275 = pneg %p80
        %p276 = pneg %p77
        %p277 = pneg %p101
        %p278 = pneg %p98
        %p279 = pneg %p122
        %p280 = pneg %p119
        %p281 = pneg %p150
        %p282 = pneg %p147
        %s283 = sand.u32 %s137, 1
        %s284 = scalar_lea.sflag [#allocation5], %s283
        %s285 = sand.u32 %s137, 1
        %s286 = smul.addr %s285, 96
        %s287 = scalar_lea.vmem [#allocation7], %s286
        %s288 = smul.u32 3, %s26
        %s289 = smul.u32 3, %s26
        %s290 = smul.u32 %s25, %s26
        %s291 = smul.u32 3, %s290
        %v293 = vld [vmem:[%s252] sm:$0xff]
        %v294 = vld [vmem:[%s252 + $0x8] sm:$0xff]
        %v295 = vld [vmem:[%s252 + $0x10] sm:$0xff]
        %v296 = vld [vmem:[%s252 + $0x18] sm:$0xff]
        %v297 = vld [vmem:[%s252 + $0x20] sm:$0xff]
        %v298 = vld [vmem:[%s252 + $0x28] sm:$0xff]
        %v299 = vld [vmem:[%s260] sm:$0x1]
        %v300 = vld [vmem:[%s260 + $0x1] sm:$0x1]
        %v301 = vld [vmem:[%s260 + $0x2] sm:$0x1]
        %v305 = vlaneseq
        %v306 = vshrl.u32 %v305, 7
        %v307 = vsub.s32 0, %v306
        %v308 = vrot.slane %v299, %v307
        %v309 = vlaneseq
        %v310 = vshrl.u32 %v309, 7
        %v311 = vsub.s32 0, %v310
        %v312 = vrot.slane %v300, %v311
        %v313 = vlaneseq
        %v314 = vshrl.u32 %v313, 7
        %v315 = vsub.s32 0, %v314
        %v316 = vrot.slane %v301, %v315
        %v320 = vmul.f32 %v293, %v308
        %v321 = vmul.f32 %v294, %v308
        %v322 = vmul.f32 %v295, %v312
        %v323 = vmul.f32 %v296, %v312
        %v324 = vmul.f32 %v297, %v316
        %v325 = vmul.f32 %v298, %v316
        %s326 = scalar_lea.vmem %s260, 3 [#allocation6]
        %v327 = vld [vmem:[%s326] sm:$0x1]
        %v328 = vld [vmem:[%s326 + $0x1] sm:$0x1]
        %v329 = vld [vmem:[%s326 + $0x2] sm:$0x1]
        %v333 = vlaneseq
        %v334 = vshrl.u32 %v333, 7
        %v335 = vsub.s32 0, %v334
        %v336 = vrot.slane %v327, %v335
        %v337 = vlaneseq
        %v338 = vshrl.u32 %v337, 7
        %v339 = vsub.s32 0, %v338
        %v340 = vrot.slane %v328, %v339
        %v341 = vlaneseq
        %v342 = vshrl.u32 %v341, 7
        %v343 = vsub.s32 0, %v342
        %v344 = vrot.slane %v329, %v343
        %v348 = vadd.f32 %v320, %v336
        %v349 = vadd.f32 %v321, %v336
        %v350 = vadd.f32 %v322, %v340
        %v351 = vadd.f32 %v323, %v340
        %v352 = vadd.f32 %v324, %v344
        %v353 = vadd.f32 %v325, %v344
        %p354 = scmp.eq.s32.totalorder %s25, 0
        %p355 = scmp.eq.s32.totalorder %s26, 0
        %p356 = pnand %p354, %p355
        %p357 = pneg %p356
        // Predicated region
        $region75: #{tpu_custom_call.1} parent=65 // pred_check
          _
        $region76: #{tpu_custom_call.1} parent=65 // pred_check_branch
          %359 = sbr.rel (%p356) target = $region78
        $region77: #{tpu_custom_call.1} parent=65 // pred_region
          %vm360 = vcmask 0
          %361 = vst.msk [vmem:[#allocation2] sm:$0x1] %vm360, -inf
        $region78: #{tpu_custom_call.1} parent=65 // pred_fallthru
          _
        // Predicated region
        $region79: #{tpu_custom_call.1} parent=65 // pred_check
          %p362 = pneg %p354
        $region80: #{tpu_custom_call.1} parent=65 // pred_check_branch
          %364 = sbr.rel (%p362) target = $region82
        $region81: #{tpu_custom_call.1} parent=65 // pred_region
          %v365 = vmax.f32 %v348, %v350
          %v366 = vmax.f32 %v349, %v351
          %v367 = vmax.f32 %v365, %v352
          %v368 = vmax.f32 %v366, %v353
          %v369 = vld [vmem:[#allocation2] sm:$0x1]
          %vm370 = vcmask 130048
          %v371 = vsel %vm370, %v367, -inf
          %v372 = vsel %vm370, %v368, -inf
          %v373 = vmax.f32 %v371, %v372
          %374 = vmax.xlane.f32.xlu0 %v373
          %v375 = vpop.xlane.xlu0 %374
          %v376 = vrot.slane %v375, 4
          %v377 = vmax.f32 %v375, %v376
          %v378 = vrot.slane %v377, 2
          %v379 = vmax.f32 %v377, %v378
          %v380 = vrot.slane %v379, 1
          %v381 = vmax.f32 %v379, %v380
          %s382 = vtos %v381
          %v383 = vstv %s382
          %v384 = vmax.f32 %v369, %v383
          %vm385 = vcmask 0
          %386 = vst.msk [vmem:[#allocation2] sm:$0x1] %vm385, %v384
        $region82: #{tpu_custom_call.1} parent=65 // pred_fallthru
          _
        %p387 = scmp.eq.s32.totalorder %s25, 1
        // Predicated region
        $region83: #{tpu_custom_call.1} parent=65 // pred_check
          %p388 = pneg %p387
        $region84: #{tpu_custom_call.1} parent=65 // pred_check_branch
          %390 = sbr.rel (%p388) target = $region86
        $region85: #{tpu_custom_call.1} parent=65 // pred_region
          %v391 = vld [vmem:[#allocation2] sm:$0x1]
          %v392 = vrcp.pop %v391
          %v393 = vmul.f32 1.0, %v392
          %v394 = vld [vmem:[%s2] sm:$0xf]
          %v395 = vld [vmem:[%s2 + $0x4] sm:$0xf]
          %v396 = vld [vmem:[%s3] sm:$0xf]
          %v397 = vld [vmem:[%s3 + $0x4] sm:$0xf]
          %v398 = vld [vmem:[%s3 + $0x8] sm:$0xf]
          %v399 = vld [vmem:[%s3 + $0xc] sm:$0xf]
          %v401 = vlaneseq
          %v402 = vshrl.u32 %v401, 7
          %v403 = vsub.s32 0, %v402
          %v404 = vrot.slane %v393, %v403
          %405 = vset.pattern.permute.xlu0 0
          %406 = vperm.xlu0 %405, %v404
          %v407 = vpop.permute.xlu0 %406
          %v409 = vmul.f32 %v348, %v407
          %v410 = vmul.f32 %v349, %v407
          %v411 = vmax.f32 %v409, 0.0
          %v412 = vmax.f32 %v410, 0.0
          %v413 = vmin.f32 %v411, 1.0
          %v414 = vmin.f32 %v412, 1.0
          %v415 = vpack.c.bf16 %v414, %v413
          %v418 = vunpack.c.l.b16 %v394
          %v419 = vunpack.c.l.b16 %v395
          %v420 = vpack.c.b16 %v419, %v418
          %vm422 = vcmask 130048
          %v424 = vsel %vm422, %v415, 0
          %426 = vmatprep.subr.bf16.mxu0 0
          %427 = vmatpush1.bf16.msra.mxu0 %v420
          %428 = vmatprep.subr.bf16.mxu0 0
          %429 = vmatpush1.bf16.msra.mxu0 0
          %430 = vmatprep.subr.bf16.mxu0 0
          %431 = vmatpush1.bf16.msra.mxu0 0
          %432 = vmatprep.subr.bf16.mxu0 0
          %433 = vmatpush1.bf16.msra.mxu0 0
          %434 = vmatprep.subr.bf16.mxu0 0
          %435 = vmatpush1.bf16.msra.mxu0 0
          %436 = vmatprep.subr.bf16.mxu0 0
          %437 = vmatpush1.bf16.msra.mxu0 0
          %438 = vmatprep.subr.bf16.mxu0 0
          %439 = vmatpush1.bf16.msra.mxu0 0
          %440 = vmatprep.subr.bf16.mxu0 0
          %441 = vmatpush1.bf16.msra.mxu0 0
          %442 = vmatprep.subr.bf16.mxu0 0
          %443 = vmatpush1.bf16.msra.mxu0 0
          %444 = vmatprep.subr.bf16.mxu0 0
          %445 = vmatpush1.bf16.msra.mxu0 0
          %446 = vmatprep.subr.bf16.mxu0 0
          %447 = vmatpush1.bf16.msra.mxu0 0
          %448 = vmatprep.subr.bf16.mxu0 0
          %449 = vmatpush1.bf16.msra.mxu0 0
          %450 = vmatprep.subr.bf16.mxu0 0
          %451 = vmatpush1.bf16.msra.mxu0 0
          %452 = vmatprep.subr.bf16.mxu0 0
          %453 = vmatpush1.bf16.msra.mxu0 0
          %454 = vmatprep.subr.bf16.mxu0 0
          %455 = vmatpush1.bf16.msra.mxu0 0
          %456 = vmatprep.subr.bf16.mxu0 0
          %457 = vmatpush1.bf16.msra.mxu0 0
          %458 = vmatprep.mubr.bf16.mxu0 0
          %459 = vmatmul.mubr.bf16.gmra.mrb[0].mxu0 %v424
          %v460 = vpop.f32.mrb[0].mxu0
          %v461 = vadd.f32 0.0, %v460
          %v462 = vpop.f32.mrb[0].mxu0
          %v463 = vpop.f32.mrb[0].mxu0
          %v464 = vadd.f32 0.0, %v463
          %v465 = vpop.f32.mrb[0].mxu0
          %466 = vdwg.mxu0
          %v467 = vpack.c.bf16 %v464, %v461
          %v472 = vunpack.c.l.b16 %v396
          %v473 = vunpack.c.l.b16 %v397
          %v474 = vunpack.c.l.b16 %v398
          %v475 = vunpack.c.l.b16 %v399
          %v476 = vpack.c.b16 %v473, %v472
          %v477 = vpack.c.b16 %v475, %v474
          %v479 = vsel %vm422, %v476, 0
          %v482 = vsel %vm422, %v477, 0
          %484 = vmatprep.subr.bf16.mxu0 0
          %485 = vmatpush1.bf16.msra.mxu0 %v467
          %486 = vmatprep.subr.bf16.mxu0 0
          %487 = vmatpush1.bf16.msra.mxu0 0
          %488 = vmatprep.subr.bf16.mxu0 0
          %489 = vmatpush1.bf16.msra.mxu0 0
          %490 = vmatprep.subr.bf16.mxu0 0
          %491 = vmatpush1.bf16.msra.mxu0 0
          %492 = vmatprep.subr.bf16.mxu0 0
          %493 = vmatpush1.bf16.msra.mxu0 0
          %494 = vmatprep.subr.bf16.mxu0 0
          %495 = vmatpush1.bf16.msra.mxu0 0
          %496 = vmatprep.subr.bf16.mxu0 0
          %497 = vmatpush1.bf16.msra.mxu0 0
          %498 = vmatprep.subr.bf16.mxu0 0
          %499 = vmatpush1.bf16.msra.mxu0 0
          %500 = vmatprep.subr.bf16.mxu0 0
          %501 = vmatpush1.bf16.msra.mxu0 0
          %502 = vmatprep.subr.bf16.mxu0 0
          %503 = vmatpush1.bf16.msra.mxu0 0
          %504 = vmatprep.subr.bf16.mxu0 0
          %505 = vmatpush1.bf16.msra.mxu0 0
          %506 = vmatprep.subr.bf16.mxu0 0
          %507 = vmatpush1.bf16.msra.mxu0 0
          %508 = vmatprep.subr.bf16.mxu0 0
          %509 = vmatpush1.bf16.msra.mxu0 0
          %510 = vmatprep.subr.bf16.mxu0 0
          %511 = vmatpush1.bf16.msra.mxu0 0
          %512 = vmatprep.subr.bf16.mxu0 0
          %513 = vmatpush1.bf16.msra.mxu0 0
          %514 = vmatprep.subr.bf16.mxu0 0
          %515 = vmatpush1.bf16.msra.mxu0 0
          %516 = vmatprep.mubr.bf16.mxu0 0
          %517 = vmatmul.mubr.bf16.gmra.mrb[0].mxu0 %v479
          %v518 = vpop.f32.mrb[0].mxu0
          %v519 = vadd.f32 0.0, %v518
          %v520 = vpop.f32.mrb[0].mxu0
          %v521 = vpop.f32.mrb[0].mxu0
          %v522 = vadd.f32 0.0, %v521
          %v523 = vpop.f32.mrb[0].mxu0
          %524 = vmatprep.mubr.bf16.mxu0 0
          %525 = vmatmul.mubr.bf16.gmra.mrb[0].mxu0 %v482
          %v526 = vpop.f32.mrb[0].mxu0
          %v527 = vadd.f32 0.0, %v526
          %v528 = vpop.f32.mrb[0].mxu0
          %v529 = vpop.f32.mrb[0].mxu0
          %v530 = vadd.f32 0.0, %v529
          %v531 = vpop.f32.mrb[0].mxu0
          %532 = vdwg.mxu0
          %vm533 = vcmask 261120
          %534 = vst.msk [vmem:[%s287] sm:$0xff] %vm533, %v519
          %535 = vst.msk [vmem:[%s287 + $0x8] sm:$0xff] %vm533, %v522
          %536 = vst.msk [vmem:[%s287 + $0x10] sm:$0xff] %vm533, %v527
          %537 = vst.msk [vmem:[%s287 + $0x18] sm:$0xff] %vm533, %v530
          %v538 = vmul.f32 %v350, %v407
          %v539 = vmul.f32 %v351, %v407
          %v540 = vmax.f32 %v538, 0.0
          %v541 = vmax.f32 %v539, 0.0
          %v542 = vmin.f32 %v540, 1.0
          %v543 = vmin.f32 %v541, 1.0
          %v544 = vpack.c.bf16 %v543, %v542
          %v546 = vsel %vm422, %v544, 0
          %548 = vmatprep.subr.bf16.mxu0 0
          %549 = vmatpush1.bf16.msra.mxu0 %v420
          %550 = vmatprep.subr.bf16.mxu0 0
          %551 = vmatpush1.bf16.msra.mxu0 0
          %552 = vmatprep.subr.bf16.mxu0 0
          %553 = vmatpush1.bf16.msra.mxu0 0
          %554 = vmatprep.subr.bf16.mxu0 0
          %555 = vmatpush1.bf16.msra.mxu0 0
          %556 = vmatprep.subr.bf16.mxu0 0
          %557 = vmatpush1.bf16.msra.mxu0 0
          %558 = vmatprep.subr.bf16.mxu0 0
          %559 = vmatpush1.bf16.msra.mxu0 0
          %560 = vmatprep.subr.bf16.mxu0 0
          %561 = vmatpush1.bf16.msra.mxu0 0
          %562 = vmatprep.subr.bf16.mxu0 0
          %563 = vmatpush1.bf16.msra.mxu0 0
          %564 = vmatprep.subr.bf16.mxu0 0
          %565 = vmatpush1.bf16.msra.mxu0 0
          %566 = vmatprep.subr.bf16.mxu0 0
          %567 = vmatpush1.bf16.msra.mxu0 0
          %568 = vmatprep.subr.bf16.mxu0 0
          %569 = vmatpush1.bf16.msra.mxu0 0
          %570 = vmatprep.subr.bf16.mxu0 0
          %571 = vmatpush1.bf16.msra.mxu0 0
          %572 = vmatprep.subr.bf16.mxu0 0
          %573 = vmatpush1.bf16.msra.mxu0 0
          %574 = vmatprep.subr.bf16.mxu0 0
          %575 = vmatpush1.bf16.msra.mxu0 0
          %576 = vmatprep.subr.bf16.mxu0 0
          %577 = vmatpush1.bf16.msra.mxu0 0
          %578 = vmatprep.subr.bf16.mxu0 0
          %579 = vmatpush1.bf16.msra.mxu0 0
          %580 = vmatprep.mubr.bf16.mxu0 0
          %581 = vmatmul.mubr.bf16.gmra.mrb[0].mxu0 %v546
          %v582 = vpop.f32.mrb[0].mxu0
          %v583 = vadd.f32 0.0, %v582
          %v584 = vpop.f32.mrb[0].mxu0
          %v585 = vpop.f32.mrb[0].mxu0
          %v586 = vadd.f32 0.0, %v585
          %v587 = vpop.f32.mrb[0].mxu0
          %588 = vdwg.mxu0
          %v589 = vpack.c.bf16 %v586, %v583
          %590 = vmatprep.subr.bf16.mxu0 0
          %591 = vmatpush1.bf16.msra.mxu0 %v589
          %592 = vmatprep.subr.bf16.mxu0 0
          %593 = vmatpush1.bf16.msra.mxu0 0
          %594 = vmatprep.subr.bf16.mxu0 0
          %595 = vmatpush1.bf16.msra.mxu0 0
          %596 = vmatprep.subr.bf16.mxu0 0
          %597 = vmatpush1.bf16.msra.mxu0 0
          %598 = vmatprep.subr.bf16.mxu0 0
          %599 = vmatpush1.bf16.msra.mxu0 0
          %600 = vmatprep.subr.bf16.mxu0 0
          %601 = vmatpush1.bf16.msra.mxu0 0
          %602 = vmatprep.subr.bf16.mxu0 0
          %603 = vmatpush1.bf16.msra.mxu0 0
          %604 = vmatprep.subr.bf16.mxu0 0
          %605 = vmatpush1.bf16.msra.mxu0 0
          %606 = vmatprep.subr.bf16.mxu0 0
          %607 = vmatpush1.bf16.msra.mxu0 0
          %608 = vmatprep.subr.bf16.mxu0 0
          %609 = vmatpush1.bf16.msra.mxu0 0
          %610 = vmatprep.subr.bf16.mxu0 0
          %611 = vmatpush1.bf16.msra.mxu0 0
          %612 = vmatprep.subr.bf16.mxu0 0
          %613 = vmatpush1.bf16.msra.mxu0 0
          %614 = vmatprep.subr.bf16.mxu0 0
          %615 = vmatpush1.bf16.msra.mxu0 0
          %616 = vmatprep.subr.bf16.mxu0 0
          %617 = vmatpush1.bf16.msra.mxu0 0
          %618 = vmatprep.subr.bf16.mxu0 0
          %619 = vmatpush1.bf16.msra.mxu0 0
          %620 = vmatprep.subr.bf16.mxu0 0
          %621 = vmatpush1.bf16.msra.mxu0 0
          %622 = vmatprep.mubr.bf16.mxu0 0
          %623 = vmatmul.mubr.bf16.gmra.mrb[0].mxu0 %v479
          %v624 = vpop.f32.mrb[0].mxu0
          %v625 = vadd.f32 0.0, %v624
          %v626 = vpop.f32.mrb[0].mxu0
          %v627 = vpop.f32.mrb[0].mxu0
          %v628 = vadd.f32 0.0, %v627
          %v629 = vpop.f32.mrb[0].mxu0
          %630 = vmatprep.mubr.bf16.mxu0 0
          %631 = vmatmul.mubr.bf16.gmra.mrb[0].mxu0 %v482
          %v632 = vpop.f32.mrb[0].mxu0
          %v633 = vadd.f32 0.0, %v632
          %v634 = vpop.f32.mrb[0].mxu0
          %v635 = vpop.f32.mrb[0].mxu0
          %v636 = vadd.f32 0.0, %v635
          %v637 = vpop.f32.mrb[0].mxu0
          %638 = vdwg.mxu0
          %s639 = scalar_lea.vmem %s287, 32 [#allocation7]
          %640 = vst.msk [vmem:[%s639] sm:$0xff] %vm533, %v625
          %641 = vst.msk [vmem:[%s639 + $0x8] sm:$0xff] %vm533, %v628
          %642 = vst.msk [vmem:[%s639 + $0x10] sm:$0xff] %vm533, %v633
          %643 = vst.msk [vmem:[%s639 + $0x18] sm:$0xff] %vm533, %v636
          %v644 = vmul.f32 %v352, %v407
          %v645 = vmul.f32 %v353, %v407
          %v646 = vmax.f32 %v644, 0.0
          %v647 = vmax.f32 %v645, 0.0
          %v648 = vmin.f32 %v646, 1.0
          %v649 = vmin.f32 %v647, 1.0
          %v650 = vpack.c.bf16 %v649, %v648
          %v652 = vsel %vm422, %v650, 0
          %654 = vmatprep.subr.bf16.mxu0 0
          %655 = vmatpush1.bf16.msra.mxu0 %v420
          %656 = vmatprep.subr.bf16.mxu0 0
          %657 = vmatpush1.bf16.msra.mxu0 0
          %658 = vmatprep.subr.bf16.mxu0 0
          %659 = vmatpush1.bf16.msra.mxu0 0
          %660 = vmatprep.subr.bf16.mxu0 0
          %661 = vmatpush1.bf16.msra.mxu0 0
          %662 = vmatprep.subr.bf16.mxu0 0
          %663 = vmatpush1.bf16.msra.mxu0 0
          %664 = vmatprep.subr.bf16.mxu0 0
          %665 = vmatpush1.bf16.msra.mxu0 0
          %666 = vmatprep.subr.bf16.mxu0 0
          %667 = vmatpush1.bf16.msra.mxu0 0
          %668 = vmatprep.subr.bf16.mxu0 0
          %669 = vmatpush1.bf16.msra.mxu0 0
          %670 = vmatprep.subr.bf16.mxu0 0
          %671 = vmatpush1.bf16.msra.mxu0 0
          %672 = vmatprep.subr.bf16.mxu0 0
          %673 = vmatpush1.bf16.msra.mxu0 0
          %674 = vmatprep.subr.bf16.mxu0 0
          %675 = vmatpush1.bf16.msra.mxu0 0
          %676 = vmatprep.subr.bf16.mxu0 0
          %677 = vmatpush1.bf16.msra.mxu0 0
          %678 = vmatprep.subr.bf16.mxu0 0
          %679 = vmatpush1.bf16.msra.mxu0 0
          %680 = vmatprep.subr.bf16.mxu0 0
          %681 = vmatpush1.bf16.msra.mxu0 0
          %682 = vmatprep.subr.bf16.mxu0 0
          %683 = vmatpush1.bf16.msra.mxu0 0
          %684 = vmatprep.subr.bf16.mxu0 0
          %685 = vmatpush1.bf16.msra.mxu0 0
          %686 = vmatprep.mubr.bf16.mxu0 0
          %687 = vmatmul.mubr.bf16.gmra.mrb[0].mxu0 %v652
          %v688 = vpop.f32.mrb[0].mxu0
          %v689 = vadd.f32 0.0, %v688
          %v690 = vpop.f32.mrb[0].mxu0
          %v691 = vpop.f32.mrb[0].mxu0
          %v692 = vadd.f32 0.0, %v691
          %v693 = vpop.f32.mrb[0].mxu0
          %694 = vdwg.mxu0
          %v695 = vpack.c.bf16 %v692, %v689
          %696 = vmatprep.subr.bf16.mxu0 0
          %697 = vmatpush1.bf16.msra.mxu0 %v695
          %698 = vmatprep.subr.bf16.mxu0 0
          %699 = vmatpush1.bf16.msra.mxu0 0
          %700 = vmatprep.subr.bf16.mxu0 0
          %701 = vmatpush1.bf16.msra.mxu0 0
          %702 = vmatprep.subr.bf16.mxu0 0
          %703 = vmatpush1.bf16.msra.mxu0 0
          %704 = vmatprep.subr.bf16.mxu0 0
          %705 = vmatpush1.bf16.msra.mxu0 0
          %706 = vmatprep.subr.bf16.mxu0 0
          %707 = vmatpush1.bf16.msra.mxu0 0
          %708 = vmatprep.subr.bf16.mxu0 0
          %709 = vmatpush1.bf16.msra.mxu0 0
          %710 = vmatprep.subr.bf16.mxu0 0
          %711 = vmatpush1.bf16.msra.mxu0 0
          %712 = vmatprep.subr.bf16.mxu0 0
          %713 = vmatpush1.bf16.msra.mxu0 0
          %714 = vmatprep.subr.bf16.mxu0 0
          %715 = vmatpush1.bf16.msra.mxu0 0
          %716 = vmatprep.subr.bf16.mxu0 0
          %717 = vmatpush1.bf16.msra.mxu0 0
          %718 = vmatprep.subr.bf16.mxu0 0
          %719 = vmatpush1.bf16.msra.mxu0 0
          %720 = vmatprep.subr.bf16.mxu0 0
          %721 = vmatpush1.bf16.msra.mxu0 0
          %722 = vmatprep.subr.bf16.mxu0 0
          %723 = vmatpush1.bf16.msra.mxu0 0
          %724 = vmatprep.subr.bf16.mxu0 0
          %725 = vmatpush1.bf16.msra.mxu0 0
          %726 = vmatprep.subr.bf16.mxu0 0
          %727 = vmatpush1.bf16.msra.mxu0 0
          %728 = vmatprep.mubr.bf16.mxu0 0
          %729 = vmatmul.mubr.bf16.gmra.mrb[0].mxu0 %v479
          %v730 = vpop.f32.mrb[0].mxu0
          %v731 = vadd.f32 0.0, %v730
          %v732 = vpop.f32.mrb[0].mxu0
          %v733 = vpop.f32.mrb[0].mxu0
          %v734 = vadd.f32 0.0, %v733
          %v735 = vpop.f32.mrb[0].mxu0
          %736 = vmatprep.mubr.bf16.mxu0 0
          %737 = vmatmul.mubr.bf16.gmra.mrb[0].mxu0 %v482
          %v738 = vpop.f32.mrb[0].mxu0
          %v739 = vadd.f32 0.0, %v738
          %v740 = vpop.f32.mrb[0].mxu0
          %v741 = vpop.f32.mrb[0].mxu0
          %v742 = vadd.f32 0.0, %v741
          %v743 = vpop.f32.mrb[0].mxu0
          %744 = vdwg.mxu0
          %s745 = scalar_lea.vmem %s287, 64 [#allocation7]
          %746 = vst.msk [vmem:[%s745] sm:$0xff] %vm533, %v731
          %747 = vst.msk [vmem:[%s745 + $0x8] sm:$0xff] %vm533, %v734
          %748 = vst.msk [vmem:[%s745 + $0x10] sm:$0xff] %vm533, %v739
          %749 = vst.msk [vmem:[%s745 + $0x18] sm:$0xff] %vm533, %v742
        $region86: #{tpu_custom_call.1} parent=65 // pred_fallthru
          _
        %s750 = sand.u32 %s137, 1
        %s751 = scalar_lea.sflag [#allocation5], %s750
        %s752 = sand.u32 %s137, 1
        %s753 = smul.addr %s752, 96
        %s754 = scalar_lea.vmem [#allocation7], %s753
        // Predicated region
        $region87: #{tpu_custom_call.1} parent=65 // pred_check
          %p755 = pneg %p147
        $region88: #{tpu_custom_call.1} parent=65 // pred_check_branch
          %757 = sbr.rel (%p755) target = $region90
        $region89: #{tpu_custom_call.1} parent=65 // pred_region
          %s758 = smul.u32 %s25, %s26
          %s759 = smul.u32 3, %s758
          %s761 = ssub.s32 1536, 1536
          %762 = vsyncadd %s751, %s761
          %s763 = smul.addr %s759, 4
          %s764 = smul.addr %s763, 128
          %s765 = scalar_lea.hbm %s4, %s764
          %s766 = sshll.u32 %s754, 4
          %s767 = int_to_ptr.vmem [resolvable:$true] %s766
          %772 = dma.vmem_to_hbm [thread:$0]  %s767, 1536, %s765, %s751, 128, 128, 8
        $region90: #{tpu_custom_call.1} parent=65 // pred_fallthru
          _
      $region66: #{tpu_custom_call.1} parent=5 // pred_fallthru
        _
      %p773 = scmp.le.s32.totalorder 2, %s16
      // Predicated region
      $region91: #{tpu_custom_call.1} parent=5 // pred_check
        %p774 = pneg %p773
      $region92: #{tpu_custom_call.1} parent=5 // pred_check_branch
        %776 = sbr.rel (%p774) target = $region94
      $region93: #{tpu_custom_call.1} parent=5 // pred_region
        %s777 = ssub.s32 %s16, 2
        // Predicated region
        $region95: #{tpu_custom_call.1} parent=93 // pred_check
          %p778 = pneg %p153
        $region96: #{tpu_custom_call.1} parent=93 // pred_check_branch
          %780 = sbr.rel (%p778) target = $region98
        $region97: #{tpu_custom_call.1} parent=93 // pred_region
          %s781 = sand.u32 %s138, 1
          %s782 = scalar_lea.sflag [#allocation5], %s781
          %s783 = sand.u32 %s138, 1
          %s784 = smul.addr %s783, 96
          %s785 = scalar_lea.vmem [#allocation7], %s784
          %786 = dma.done %s782, 1536
        $region98: #{tpu_custom_call.1} parent=93 // pred_fallthru
          _
      $region94: #{tpu_custom_call.1} parent=5 // pred_fallthru
        _
    $region6: #{tpu_custom_call.1} parent=1 // loop_footer
      %s20 = sadd.s32 1, %s16
    $region7: #{tpu_custom_call.1} parent=1 // loop_footer_branch
      %15 = sbr.rel target = $region3
    $region8: #{tpu_custom_call.1} parent=1 // loop_exit
      _
    %787 = vsyncpa [#allocation4], 1
    %s788 = scalar_lea.sflag [#allocation4], 1
    %789 = vsyncpa %s788, 1
    %790 = vsyncpa [#allocation5], 1
    %s791 = scalar_lea.sflag [#allocation5], 1
    %792 = vsyncpa %s791, 1

</llo_original>
